<compile_context>
chip_gen: v7x
topology: tpu7x:2x2x1
jax: 0.10.0
libtpu: 0.0.40
codegen_flags: <defaults>
</compile_context>

<pallas_src>
import functools
import math

import jax
import jax.numpy as jnp
from jax.experimental import pallas as pl
from jax.experimental.pallas import tpu as pltpu


def _cdc_kernel(x_ref, w_ref, o_ref, xp_ref, *, W, HW, Cp, Bblk, OFF):
    """One grid step = Bblk batch elements.

    x_ref : (Bblk, Cp, HW)          flattened NCHW images, channels padded to Cp
    w_ref : (Cout, 9*Cp)            folded, im2col-flattened weights
    o_ref : (Bblk, Cout, HW)        flattened NCHW outputs (HW on the lane axis)
    xp_ref: (Bblk*Cp, HW + 2*OFF)   row-padded image scratch, OFF % 128 == 0
    """
    dt = x_ref.dtype
    rows = Bblk * Cp

    # Halo zero-fill + image copy.  All stores start at lane offsets that are
    # multiples of 128 and span whole sublane tiles (Cp is a pack multiple) ->
    # unmasked, aligned stores.  Rewritten every grid step: the scratch
    # persists across steps and with megacore sharding a core may never run
    # step 0, so no pl.when(step == 0) init.
    xp_ref[:, :OFF] = jnp.zeros((rows, OFF), dt)
    xp_ref[:, OFF + HW:OFF + HW + OFF] = jnp.zeros((rows, OFF), dt)
    for b in range(Bblk):
        xp_ref[b * Cp:(b + 1) * Cp, OFF:OFF + HW] = x_ref[b]

    # Column masks, built once at (1, HW) and broadcast over (Cp, HW) slabs.
    # In the flat row-padded layout the kw=0 tap at column 0 and the kw=2 tap
    # at column W-1 wrap into the neighbouring image row; masking them
    # reproduces the zero width-padding of the 2-D conv.  Row over/underflow
    # (kh=0 at h=0, kh=2 at h=H-1) lands in the zero halos and needs no mask.
    col = jax.lax.broadcasted_iota(jnp.int32, (1, HW), 1) % W
    not_first_col = col != 0
    not_last_col = col != (W - 1)

    # Build the im2col patch matrix fully in registers.  Each slab is Cp rows
    # (a whole number of sublane tiles) and HW lanes, so both the sublane and
    # the lane concatenations below are tile-aligned.
    per_batch = []
    for b in range(Bblk):
        r0 = b * Cp
        slabs = []
        for kh in range(3):
            for kw in range(3):
                start = OFF + (kh - 1) * W + (kw - 1)            # static offset
                slab = xp_ref[r0:r0 + Cp, start:start + HW]      # (Cp, HW)
                if kw == 0:
                    slab = jnp.where(not_first_col, slab, 0.0)
                elif kw == 2:
                    slab = jnp.where(not_last_col, slab, 0.0)
                slabs.append(slab)
        per_batch.append(jnp.concatenate(slabs, axis=0))         # (9*Cp, HW)
    patch = per_batch[0] if Bblk == 1 else jnp.concatenate(per_batch, axis=1)

    # Single MXU matmul with N fattened over batch:
    #   (Cout, 9*Cp) @ (9*Cp, Bblk*HW) -> (Cout, Bblk*HW), f32 accumulation.
    # At Cout=8, K<=144 the MXU is under-occupied on M/K by design; N and the
    # patch build are the relevant levers at these channel counts.
    acc = jnp.dot(w_ref[...], patch, preferred_element_type=jnp.float32)

    for b in range(Bblk):
        o_ref[b] = acc[:, b * HW:(b + 1) * HW].astype(o_ref.dtype)


def cdc_layer(x_nchw, weight_oihw, theta=0.8, compute_dtype=None,
              block_batch=None):
    """Center Difference Convolution forward (k=3, s=1, p=1, d=1, groups=1,
    bias=False).  NCHW in / NCHW out, matching the PyTorch module."""
    B, Cin, H, W = x_nchw.shape
    Cout, Cin_w, KH, KW = weight_oihw.shape
    assert (Cin_w, KH, KW) == (Cin, 3, 3), "CDCLayer kernel assumes 3x3 conv"

    HW = H * W
    dt = (jnp.dtype(compute_dtype) if compute_dtype is not None
          else jnp.dtype(x_nchw.dtype))

    # Sublane pack (rows per (., 128) tile): 8 for 4-byte dtypes, 16 for 2-byte.
    pack = (8 * 4) // dt.itemsize
    Cp = -(-Cin // pack) * pack            # channels padded to the pack
    Kp = 9 * Cp                            # contraction dim (pack multiple)

    # Lane-aligned zero halo, wide enough for one image row + 1 corner element.
    OFF = -(-(W + 1) // 128) * 128

    # Fold the center-difference branch into the 3x3 weights (exact algebra):
    #   conv(x, W) - theta*conv1x1(x, W.sum((2,3)))  ==  conv(x, W')
    #   with W'[:,:,1,1] = W[:,:,1,1] - theta*W.sum((2,3)).
    w_f32 = weight_oihw.astype(jnp.float32)
    w_sum = jnp.sum(w_f32, axis=(2, 3))                          # (Cout, Cin)
    w_fold = w_f32.at[:, :, 1, 1].add(-float(theta) * w_sum)
    w_pad = jnp.pad(w_fold, ((0, 0), (0, Cp - Cin), (0, 0), (0, 0)))
    # Row order (kh, kw, ci) matches the kernel's patch-row layout.
    w_mat = jnp.transpose(w_pad, (0, 2, 3, 1)).reshape(Cout, Kp).astype(dt)

    # Channel pad (zeros) + free contiguous reshape; no spatial pad/transpose.
    x_p = x_nchw.astype(dt)
    if Cp != Cin:
        x_p = jnp.pad(x_p, ((0, 0), (0, Cp - Cin), (0, 0), (0, 0)))
    x_flat = x_p.reshape(B, Cp, HW)

    # Batch block: fatten each grid step (and the matmul N dim) while keeping
    # the in-register patch value modest.
    if block_batch is None:
        budget = 512 * 1024                      # bytes for the patch value
        per_b = Kp * HW * dt.itemsize
        bb = max(1, min(8, budget // max(per_b, 1)))
        bb = min(bb, B)
        if HW % 128 != 0:
            bb = 1                               # keep lane concat aligned
        while B % bb:
            bb -= 1
    else:
        bb = block_batch
        assert B % bb == 0
    grid = (B // bb,)

    kernel = functools.partial(_cdc_kernel, W=W, HW=HW, Cp=Cp, Bblk=bb, OFF=OFF)

    out_flat = pl.pallas_call(
        kernel,
        out_shape=jax.ShapeDtypeStruct((B, Cout, HW), dt),
        grid_spec=pltpu.PrefetchScalarGridSpec(
            num_scalar_prefetch=0,
            grid=grid,
            in_specs=[
                pl.BlockSpec((bb, Cp, HW), lambda i: (i, 0, 0)),
                # Constant index_map: same (Cout, Kp) weight tile every step.
                pl.BlockSpec((Cout, Kp), lambda i: (0, 0)),
            ],
            out_specs=pl.BlockSpec((bb, Cout, HW), lambda i: (i, 0, 0)),
            scratch_shapes=[
                pltpu.VMEM((bb * Cp, HW + 2 * OFF), dt),   # row-padded images
            ],
        ),
        compiler_params=pltpu.CompilerParams(
            dimension_semantics=("parallel",),
            vmem_limit_bytes=32 * 1024 * 1024),
    )(x_flat, w_mat)

    # Free reshape back to (B, Cout, H, W); output dtype follows the input.
    return out_flat.reshape(B, Cout, H, W).astype(x_nchw.dtype)


def _reference(x_nchw, weight_oihw, theta):
    """Pure-JAX reference (lax conv) of the original, un-folded formula."""
    dn = jax.lax.conv_dimension_numbers(x_nchw.shape, weight_oihw.shape,
                                        ('NCHW', 'OIHW', 'NCHW'))
    out_normal = jax.lax.conv_general_dilated(
        x_nchw, weight_oihw, window_strides=(1, 1), padding=((1, 1), (1, 1)),
        dimension_numbers=dn)
    kdiff = jnp.sum(weight_oihw, axis=(2, 3))[:, :, None, None]
    out_diff = jax.lax.conv_general_dilated(
        x_nchw, kdiff, window_strides=(1, 1), padding=((0, 0), (0, 0)),
        dimension_numbers=dn)
    return out_normal - theta * out_diff


if __name__ == "__main__":
    key = jax.random.PRNGKey(0)
    kx, kw_key = jax.random.split(key)

    B, Cin, Cout, H, W = 2, 4, 8, 16, 16
    theta = 0.8

    x = jax.random.normal(kx, (B, Cin, H, W), dtype=jnp.float32)

    # Deterministic Conv2d-style init: U(-1/sqrt(fan_in), 1/sqrt(fan_in)).
    fan_in = Cin * 3 * 3
    bound = 1.0 / math.sqrt(fan_in)
    weight = jax.random.uniform(kw_key, (Cout, Cin, 3, 3), dtype=jnp.float32,
                                minval=-bound, maxval=bound)

    out = jax.block_until_ready(cdc_layer(x, weight, theta=theta))
    ref = _reference(x, weight, theta)
    assert out.shape == (B, Cout, H, W)
    assert jnp.allclose(out, ref, atol=1e-3, rtol=1e-3)

    # theta == 0 path (PyTorch early return) degenerates to a plain conv.
    out0 = jax.block_until_ready(cdc_layer(x, weight, theta=0.0))
    assert jnp.allclose(out0, _reference(x, weight, 0.0), atol=1e-3, rtol=1e-3)

    # bf16 compute path (MXU-native on v6e/v7x); f32 accumulation in-kernel.
    # (Keep the default f32 path on v5e, see header note.)
    out_bf = jax.block_until_ready(
        cdc_layer(x, weight, theta=theta, compute_dtype=jnp.bfloat16))
    assert jnp.allclose(out_bf, ref, atol=5e-2, rtol=5e-2)

    print("KERNEL_OK")
</pallas_src>

<mosaic_0001>
module attributes {stable_mosaic.version = 11 : i64} {
  func.func @_cdc_kernel(%arg0: i32, %arg1: memref<2x8x256xf32, #tpu.memory_space<vmem>>, %arg2: memref<8x72xf32, #tpu.memory_space<vmem>>, %arg3: memref<2x8x256xf32, #tpu.memory_space<vmem>>, %arg4: memref<16x512xf32, #tpu.memory_space<vmem>>) attributes {dimension_semantics = [#tpu.dimension_semantics<parallel>], iteration_bounds = array<i64: 1>, scalar_prefetch = 0 : i64, scratch_operands = 1 : i64, tpu.core_type = #tpu.core_type<tc>, window_params = [{transform_indices = @transform_0, window_bounds = array<i64: 2, 8, 256>}, {pipeline_mode = #tpu.pipeline_mode<synchronous>, transform_indices = @transform_1, window_bounds = array<i64: 8, 72>}, {transform_indices = @transform_2, window_bounds = array<i64: 2, 8, 256>}]} {
    %cst = arith.constant 0.000000e+00 : f32
    %0 = vector.broadcast %cst : f32 to vector<16x128xf32>
    %c0 = arith.constant 0 : index
    %c0_0 = arith.constant 0 : index
    %1 = vector.load %arg4[%c0, %c0_0] : memref<16x512xf32, #tpu.memory_space<vmem>>, vector<16x128xf32>
    tpu.vector_store %arg4[%c0, %c0_0], %0 {strides = array<i32>} : memref<16x512xf32, #tpu.memory_space<vmem>>, vector<16x128xf32>,
    %cst_1 = arith.constant 0.000000e+00 : f32
    %2 = vector.broadcast %cst_1 : f32 to vector<16x128xf32>
    %c0_2 = arith.constant 0 : index
    %c384 = arith.constant 384 : index
    %3 = vector.load %arg4[%c0_2, %c384] : memref<16x512xf32, #tpu.memory_space<vmem>>, vector<16x128xf32>
    tpu.vector_store %arg4[%c0_2, %c384], %2 {strides = array<i32>} : memref<16x512xf32, #tpu.memory_space<vmem>>, vector<16x128xf32>,
    %c0_3 = arith.constant 0 : index
    %c0_4 = arith.constant 0 : index
    %c0_5 = arith.constant 0 : index
    %4 = vector.load %arg1[%c0_3, %c0_4, %c0_5] : memref<2x8x256xf32, #tpu.memory_space<vmem>>, vector<1x8x256xf32>
    %5 = vector.shape_cast %4 : vector<1x8x256xf32> to vector<8x256xf32>
    %c0_6 = arith.constant 0 : index
    %c128 = arith.constant 128 : index
    %6 = vector.load %arg4[%c0_6, %c128] : memref<16x512xf32, #tpu.memory_space<vmem>>, vector<8x256xf32>
    tpu.vector_store %arg4[%c0_6, %c128], %5 {strides = array<i32>} : memref<16x512xf32, #tpu.memory_space<vmem>>, vector<8x256xf32>,
    %c1 = arith.constant 1 : index
    %c0_7 = arith.constant 0 : index
    %c0_8 = arith.constant 0 : index
    %7 = vector.load %arg1[%c1, %c0_7, %c0_8] : memref<2x8x256xf32, #tpu.memory_space<vmem>>, vector<1x8x256xf32>
    %8 = vector.shape_cast %7 : vector<1x8x256xf32> to vector<8x256xf32>
    %c8 = arith.constant 8 : index
    %c128_9 = arith.constant 128 : index
    %9 = vector.load %arg4[%c8, %c128_9] : memref<16x512xf32, #tpu.memory_space<vmem>>, vector<8x256xf32>
    tpu.vector_store %arg4[%c8, %c128_9], %8 {strides = array<i32>} : memref<16x512xf32, #tpu.memory_space<vmem>>, vector<8x256xf32>,
    %10 = tpu.iota {dimensions = array<i32: 1>} : vector<1x256xi32>
    %c16_i32 = arith.constant 16 : i32
    %c0_i32 = arith.constant 0 : i32
    %11 = arith.cmpi eq, %c16_i32, %c0_i32 : i32
    %c1_i32 = arith.constant 1 : i32
    %12 = arith.select %11, %c1_i32, %c16_i32 : i32
    %13 = vector.broadcast %12 : i32 to vector<1x256xi32>
    %14 = arith.remsi %10, %13 : vector<1x256xi32>
    %c0_i32_10 = arith.constant 0 : i32
    %15 = vector.broadcast %c0_i32_10 : i32 to vector<1x256xi32>
    %16 = arith.cmpi ne, %14, %15 : vector<1x256xi32>
    %c0_i32_11 = arith.constant 0 : i32
    %17 = vector.broadcast %c0_i32_11 : i32 to vector<1x256xi32>
    %18 = arith.cmpi slt, %14, %17 : vector<1x256xi32>
    %c0_i32_12 = arith.constant 0 : i32
    %19 = arith.cmpi slt, %12, %c0_i32_12 : i32
    %20 = vector.broadcast %19 : i1 to vector<1x256xi1>
    %21 = vector.broadcast %20 : vector<1x256xi1> to vector<1x256xi1>
    %22 = arith.xori %18, %21 : vector<1x256xi1>
    %23 = arith.andi %22, %16 : vector<1x256xi1>
    %24 = vector.broadcast %12 : i32 to vector<1x256xi32>
    %25 = arith.addi %14, %24 : vector<1x256xi32>
    %26 = arith.select %23, %25, %14 : vector<1x256xi1>, vector<1x256xi32>
    %c0_i32_13 = arith.constant 0 : i32
    %27 = vector.broadcast %c0_i32_13 : i32 to vector<1x256xi32>
    %28 = arith.cmpi ne, %26, %27 : vector<1x256xi32>
    %c15_i32 = arith.constant 15 : i32
    %29 = vector.broadcast %c15_i32 : i32 to vector<1x256xi32>
    %30 = arith.cmpi ne, %26, %29 : vector<1x256xi32>
    %c0_14 = arith.constant 0 : index
    %c111 = arith.constant 111 : index
    %31 = vector.load %arg4[%c0_14, %c111] : memref<16x512xf32, #tpu.memory_space<vmem>>, vector<8x256xf32>
    %cst_15 = arith.constant 0.000000e+00 : f32
    %32 = vector.shape_cast %28 : vector<1x256xi1> to vector<1x256xi1>
    %33 = vector.broadcast %32 : vector<1x256xi1> to vector<8x256xi1>
    %34 = vector.broadcast %cst_15 : f32 to vector<8x256xf32>
    %35 = arith.select %33, %31, %34 : vector<8x256xi1>, vector<8x256xf32>
    %c0_16 = arith.constant 0 : index
    %c112 = arith.constant 112 : index
    %36 = vector.load %arg4[%c0_16, %c112] : memref<16x512xf32, #tpu.memory_space<vmem>>, vector<8x256xf32>
    %c0_17 = arith.constant 0 : index
    %c113 = arith.constant 113 : index
    %37 = vector.load %arg4[%c0_17, %c113] : memref<16x512xf32, #tpu.memory_space<vmem>>, vector<8x256xf32>
    %cst_18 = arith.constant 0.000000e+00 : f32
    %38 = vector.shape_cast %30 : vector<1x256xi1> to vector<1x256xi1>
    %39 = vector.broadcast %38 : vector<1x256xi1> to vector<8x256xi1>
    %40 = vector.broadcast %cst_18 : f32 to vector<8x256xf32>
    %41 = arith.select %39, %37, %40 : vector<8x256xi1>, vector<8x256xf32>
    %c0_19 = arith.constant 0 : index
    %c127 = arith.constant 127 : index
    %42 = vector.load %arg4[%c0_19, %c127] : memref<16x512xf32, #tpu.memory_space<vmem>>, vector<8x256xf32>
    %cst_20 = arith.constant 0.000000e+00 : f32
    %43 = vector.shape_cast %28 : vector<1x256xi1> to vector<1x256xi1>
    %44 = vector.broadcast %43 : vector<1x256xi1> to vector<8x256xi1>
    %45 = vector.broadcast %cst_20 : f32 to vector<8x256xf32>
    %46 = arith.select %44, %42, %45 : vector<8x256xi1>, vector<8x256xf32>
    %c0_21 = arith.constant 0 : index
    %c128_22 = arith.constant 128 : index
    %47 = vector.load %arg4[%c0_21, %c128_22] : memref<16x512xf32, #tpu.memory_space<vmem>>, vector<8x256xf32>
    %c0_23 = arith.constant 0 : index
    %c129 = arith.constant 129 : index
    %48 = vector.load %arg4[%c0_23, %c129] : memref<16x512xf32, #tpu.memory_space<vmem>>, vector<8x256xf32>
    %cst_24 = arith.constant 0.000000e+00 : f32
    %49 = vector.shape_cast %30 : vector<1x256xi1> to vector<1x256xi1>
    %50 = vector.broadcast %49 : vector<1x256xi1> to vector<8x256xi1>
    %51 = vector.broadcast %cst_24 : f32 to vector<8x256xf32>
    %52 = arith.select %50, %48, %51 : vector<8x256xi1>, vector<8x256xf32>
    %c0_25 = arith.constant 0 : index
    %c143 = arith.constant 143 : index
    %53 = vector.load %arg4[%c0_25, %c143] : memref<16x512xf32, #tpu.memory_space<vmem>>, vector<8x256xf32>
    %cst_26 = arith.constant 0.000000e+00 : f32
    %54 = vector.shape_cast %28 : vector<1x256xi1> to vector<1x256xi1>
    %55 = vector.broadcast %54 : vector<1x256xi1> to vector<8x256xi1>
    %56 = vector.broadcast %cst_26 : f32 to vector<8x256xf32>
    %57 = arith.select %55, %53, %56 : vector<8x256xi1>, vector<8x256xf32>
    %c0_27 = arith.constant 0 : index
    %c144 = arith.constant 144 : index
    %58 = vector.load %arg4[%c0_27, %c144] : memref<16x512xf32, #tpu.memory_space<vmem>>, vector<8x256xf32>
    %c0_28 = arith.constant 0 : index
    %c145 = arith.constant 145 : index
    %59 = vector.load %arg4[%c0_28, %c145] : memref<16x512xf32, #tpu.memory_space<vmem>>, vector<8x256xf32>
    %cst_29 = arith.constant 0.000000e+00 : f32
    %60 = vector.shape_cast %30 : vector<1x256xi1> to vector<1x256xi1>
    %61 = vector.broadcast %60 : vector<1x256xi1> to vector<8x256xi1>
    %62 = vector.broadcast %cst_29 : f32 to vector<8x256xf32>
    %63 = arith.select %61, %59, %62 : vector<8x256xi1>, vector<8x256xf32>
    %64 = tpu.concatenate %35, %36, %41, %46, %47, %52, %57, %58, %63 in 0 : vector<8x256xf32>, vector<8x256xf32>, vector<8x256xf32>, vector<8x256xf32>, vector<8x256xf32>, vector<8x256xf32>, vector<8x256xf32>, vector<8x256xf32>, vector<8x256xf32> -> vector<72x256xf32>
    %c8_30 = arith.constant 8 : index
    %c111_31 = arith.constant 111 : index
    %65 = vector.load %arg4[%c8_30, %c111_31] : memref<16x512xf32, #tpu.memory_space<vmem>>, vector<8x256xf32>
    %cst_32 = arith.constant 0.000000e+00 : f32
    %66 = vector.shape_cast %28 : vector<1x256xi1> to vector<1x256xi1>
    %67 = vector.broadcast %66 : vector<1x256xi1> to vector<8x256xi1>
    %68 = vector.broadcast %cst_32 : f32 to vector<8x256xf32>
    %69 = arith.select %67, %65, %68 : vector<8x256xi1>, vector<8x256xf32>
    %c8_33 = arith.constant 8 : index
    %c112_34 = arith.constant 112 : index
    %70 = vector.load %arg4[%c8_33, %c112_34] : memref<16x512xf32, #tpu.memory_space<vmem>>, vector<8x256xf32>
    %c8_35 = arith.constant 8 : index
    %c113_36 = arith.constant 113 : index
    %71 = vector.load %arg4[%c8_35, %c113_36] : memref<16x512xf32, #tpu.memory_space<vmem>>, vector<8x256xf32>
    %cst_37 = arith.constant 0.000000e+00 : f32
    %72 = vector.shape_cast %30 : vector<1x256xi1> to vector<1x256xi1>
    %73 = vector.broadcast %72 : vector<1x256xi1> to vector<8x256xi1>
    %74 = vector.broadcast %cst_37 : f32 to vector<8x256xf32>
    %75 = arith.select %73, %71, %74 : vector<8x256xi1>, vector<8x256xf32>
    %c8_38 = arith.constant 8 : index
    %c127_39 = arith.constant 127 : index
    %76 = vector.load %arg4[%c8_38, %c127_39] : memref<16x512xf32, #tpu.memory_space<vmem>>, vector<8x256xf32>
    %cst_40 = arith.constant 0.000000e+00 : f32
    %77 = vector.shape_cast %28 : vector<1x256xi1> to vector<1x256xi1>
    %78 = vector.broadcast %77 : vector<1x256xi1> to vector<8x256xi1>
    %79 = vector.broadcast %cst_40 : f32 to vector<8x256xf32>
    %80 = arith.select %78, %76, %79 : vector<8x256xi1>, vector<8x256xf32>
    %c8_41 = arith.constant 8 : index
    %c128_42 = arith.constant 128 : index
    %81 = vector.load %arg4[%c8_41, %c128_42] : memref<16x512xf32, #tpu.memory_space<vmem>>, vector<8x256xf32>
    %c8_43 = arith.constant 8 : index
    %c129_44 = arith.constant 129 : index
    %82 = vector.load %arg4[%c8_43, %c129_44] : memref<16x512xf32, #tpu.memory_space<vmem>>, vector<8x256xf32>
    %cst_45 = arith.constant 0.000000e+00 : f32
    %83 = vector.shape_cast %30 : vector<1x256xi1> to vector<1x256xi1>
    %84 = vector.broadcast %83 : vector<1x256xi1> to vector<8x256xi1>
    %85 = vector.broadcast %cst_45 : f32 to vector<8x256xf32>
    %86 = arith.select %84, %82, %85 : vector<8x256xi1>, vector<8x256xf32>
    %c8_46 = arith.constant 8 : index
    %c143_47 = arith.constant 143 : index
    %87 = vector.load %arg4[%c8_46, %c143_47] : memref<16x512xf32, #tpu.memory_space<vmem>>, vector<8x256xf32>
    %cst_48 = arith.constant 0.000000e+00 : f32
    %88 = vector.shape_cast %28 : vector<1x256xi1> to vector<1x256xi1>
    %89 = vector.broadcast %88 : vector<1x256xi1> to vector<8x256xi1>
    %90 = vector.broadcast %cst_48 : f32 to vector<8x256xf32>
    %91 = arith.select %89, %87, %90 : vector<8x256xi1>, vector<8x256xf32>
    %c8_49 = arith.constant 8 : index
    %c144_50 = arith.constant 144 : index
    %92 = vector.load %arg4[%c8_49, %c144_50] : memref<16x512xf32, #tpu.memory_space<vmem>>, vector<8x256xf32>
    %c8_51 = arith.constant 8 : index
    %c145_52 = arith.constant 145 : index
    %93 = vector.load %arg4[%c8_51, %c145_52] : memref<16x512xf32, #tpu.memory_space<vmem>>, vector<8x256xf32>
    %cst_53 = arith.constant 0.000000e+00 : f32
    %94 = vector.shape_cast %30 : vector<1x256xi1> to vector<1x256xi1>
    %95 = vector.broadcast %94 : vector<1x256xi1> to vector<8x256xi1>
    %96 = vector.broadcast %cst_53 : f32 to vector<8x256xf32>
    %97 = arith.select %95, %93, %96 : vector<8x256xi1>, vector<8x256xf32>
    %98 = tpu.concatenate %69, %70, %75, %80, %81, %86, %91, %92, %97 in 0 : vector<8x256xf32>, vector<8x256xf32>, vector<8x256xf32>, vector<8x256xf32>, vector<8x256xf32>, vector<8x256xf32>, vector<8x256xf32>, vector<8x256xf32>, vector<8x256xf32> -> vector<72x256xf32>
    %99 = tpu.concatenate %64, %98 in 1 : vector<72x256xf32>, vector<72x256xf32> -> vector<72x512xf32>
    %c0_54 = arith.constant 0 : index
    %c0_55 = arith.constant 0 : index
    %100 = vector.load %arg2[%c0_54, %c0_55] : memref<8x72xf32, #tpu.memory_space<vmem>>, vector<8x72xf32>
    %cst_56 = arith.constant dense<0.000000e+00> : vector<8x512xf32>
    %101 = tpu.matmul %100, %99, %cst_56 {dimension_numbers = #tpu.dot_dimension_numbers<[1], [0], [0], [1], [0, 0, 1, 1], [], []>} : vector<8x72xf32>, vector<72x512xf32>, vector<8x512xf32> -> vector<8x512xf32>
    %102 = vector.extract_strided_slice %101 {offsets = [0, 0], sizes = [8, 256], strides = [1, 1]} : vector<8x512xf32> to vector<8x256xf32>
    %c0_57 = arith.constant 0 : index
    %c0_58 = arith.constant 0 : index
    %c0_59 = arith.constant 0 : index
    %103 = vector.load %arg3[%c0_57, %c0_58, %c0_59] : memref<2x8x256xf32, #tpu.memory_space<vmem>>, vector<1x8x256xf32>
    %104 = vector.shape_cast %103 : vector<1x8x256xf32> to vector<8x256xf32>
    %105 = vector.shape_cast %102 : vector<8x256xf32> to vector<1x8x256xf32>
    tpu.vector_store %arg3[%c0_57, %c0_58, %c0_59], %105 {strides = array<i32>} : memref<2x8x256xf32, #tpu.memory_space<vmem>>, vector<1x8x256xf32>,
    %106 = vector.extract_strided_slice %101 {offsets = [0, 256], sizes = [8, 256], strides = [1, 1]} : vector<8x512xf32> to vector<8x256xf32>
    %c1_60 = arith.constant 1 : index
    %c0_61 = arith.constant 0 : index
    %c0_62 = arith.constant 0 : index
    %107 = vector.load %arg3[%c1_60, %c0_61, %c0_62] : memref<2x8x256xf32, #tpu.memory_space<vmem>>, vector<1x8x256xf32>
    %108 = vector.shape_cast %107 : vector<1x8x256xf32> to vector<8x256xf32>
    %109 = vector.shape_cast %106 : vector<8x256xf32> to vector<1x8x256xf32>
    tpu.vector_store %arg3[%c1_60, %c0_61, %c0_62], %109 {strides = array<i32>} : memref<2x8x256xf32, #tpu.memory_space<vmem>>, vector<1x8x256xf32>,
    return
  }
  func.func @transform_0(%arg0: i32) -> (i32, i32, i32) {
    %c0_i32 = arith.constant 0 : i32
    %c0_i32_0 = arith.constant 0 : i32
    %c0_i32_1 = arith.constant 0 : i32
    return %arg0, %c0_i32, %c0_i32_0 : i32, i32, i32
  }
  func.func @transform_1(%arg0: i32) -> (i32, i32) {
    %c0_i32 = arith.constant 0 : i32
    %c0_i32_0 = arith.constant 0 : i32
    %c0_i32_1 = arith.constant 0 : i32
    return %c0_i32, %c0_i32_0 : i32, i32
  }
  func.func @transform_2(%arg0: i32) -> (i32, i32, i32) {
    %c0_i32 = arith.constant 0 : i32
    %c0_i32_0 = arith.constant 0 : i32
    %c0_i32_1 = arith.constant 0 : i32
    return %arg0, %c0_i32, %c0_i32_0 : i32, i32, i32
  }
}

</mosaic_0001>

<llo_original>
// kernel: tpu_custom_call.1
$region0: #{tpu_custom_call.1}
  #allocation0 [shape = 'u32[]', space=smem, size = 0x4, offset = 0x4, fixed_abs, tag = 'smem constant byte address 0x4 - core index']
  #allocation1 [shape = 'u32[144,128]{1,0:T(1,128)}', space=vmem, size = 0x12000, scoped, tag = 'internal scratch']
  #allocation2 [shape = 'f32[16,512]{1,0:T(8,128)}', space=vmem, size = 0x8000, scoped, tag = 'scratch operand']
  %s0 = inlined_call_operand.hbm [shape: f32[2,8,256], index: 0, kind: input, shape index: {}]
  %s1 = inlined_call_operand.hbm [shape: f32[8,72], index: 1, kind: input, shape index: {}]
  %s2 = inlined_call_operand.hbm [shape: f32[2,8,256], index: 2, kind: output, shape index: {}]
  %s3 = sld [smem:[#allocation0]]
  $region26: #{tpu_custom_call.1} parent=0
    _
  %s5 = ssub.s32 1, %s3
  %s6 = scalar_select 0, %s5, %s3
  $region1: #{tpu_custom_call.1} parent=0
    #allocation3 [shape = 'u8[16384]{0}', space=vmem, size = 0x4000, scoped, tag = 'input window, operand 0, single buffered']
    #allocation4 [shape = 's32[1]{0}', space=sflag, size = 0x4, scoped, tag = 'scoped memory for tpu_custom_call.1']
    #allocation5 [shape = 's32[1]{0}', space=sflag, size = 0x4, scoped, tag = 'scoped memory for tpu_custom_call.1']
    #allocation6 [shape = 'u8[4096]{0}', space=vmem, size = 0x1000, scoped, tag = 'input window, operand 1, single buffered']
    #allocation7 [shape = 's32[1]{0}', space=sflag, size = 0x4, scoped, tag = 'scoped memory for tpu_custom_call.1']
    #allocation8 [shape = 'u8[16384]{0}', space=vmem, size = 0x4000, scoped, tag = 'output window, operand 0, single buffered']
    %7 = vsyncpa [#allocation4], 0
    %8 = vsyncpa [#allocation7], 0
    %9 = vsyncpa [#allocation5], 0
    // Predicated region
    $region2: #{tpu_custom_call.1} parent=1 // pred_check
      _
    $region3: #{tpu_custom_call.1} parent=1 // pred_check_branch
      %11 = sbr.rel (0) target = $region5
    $region4: #{tpu_custom_call.1} parent=1 // pred_region
      %s13 = ssub.s32 512, 512
      %14 = vsyncadd [#allocation4], %s13
      %s15 = sshll.u32 [#allocation3], 4
      %s16 = int_to_ptr.vmem [resolvable:$true] %s15
      %21 = dma.hbm_to_vmem [thread:$0]  %s0, 512, %s16, [#allocation4], 256, 256, 16
    $region5: #{tpu_custom_call.1} parent=1 // pred_fallthru
      _
    // Predicated region
    $region6: #{tpu_custom_call.1} parent=1 // pred_check
      _
    $region7: #{tpu_custom_call.1} parent=1 // pred_check_branch
      %23 = sbr.rel (0) target = $region9
    $region8: #{tpu_custom_call.1} parent=1 // pred_region
      %s25 = ssub.s32 128, 128
      %26 = vsyncadd [#allocation7], %s25
      %s28 = sshll.u32 [#allocation6], 4
      %s29 = int_to_ptr.vmem [resolvable:$true] %s28
      %31 = dma.hbm_to_vmem [thread:$0]  %s1, 128, %s29, [#allocation7]
    $region9: #{tpu_custom_call.1} parent=1 // pred_fallthru
      _
    // Predicated region
    $region10: #{tpu_custom_call.1} parent=1 // pred_check
      _
    $region11: #{tpu_custom_call.1} parent=1 // pred_check_branch
      %33 = sbr.rel (0) target = $region13
    $region12: #{tpu_custom_call.1} parent=1 // pred_region
      %34 = dma.done [#allocation4], 512
    $region13: #{tpu_custom_call.1} parent=1 // pred_fallthru
      _
    // Predicated region
    $region14: #{tpu_custom_call.1} parent=1 // pred_check
      _
    $region15: #{tpu_custom_call.1} parent=1 // pred_check_branch
      %36 = sbr.rel (0) target = $region17
    $region16: #{tpu_custom_call.1} parent=1 // pred_region
      %37 = dma.done [#allocation7], 128
    $region17: #{tpu_custom_call.1} parent=1 // pred_fallthru
      _
    %38 = vst [vmem:[#allocation2] sm:$0xff] 0.0
    %39 = vst [vmem:[#allocation2 + $0x20] sm:$0xff] 0.0
    %40 = vst [vmem:[#allocation2 + $0x18] sm:$0xff] 0.0
    %41 = vst [vmem:[#allocation2 + $0x38] sm:$0xff] 0.0
    %v42 = vld [vmem:[#allocation3] sm:$0xff]
    %v43 = vld [vmem:[#allocation3 + $0x8] sm:$0xff]
    %44 = vst [vmem:[#allocation2 + $0x8] sm:$0xff] %v42
    %45 = vst [vmem:[#allocation2 + $0x10] sm:$0xff] %v43
    %s46 = scalar_lea.vmem [#allocation3], 16
    %v47 = vld [vmem:[%s46] sm:$0xff]
    %v48 = vld [vmem:[%s46 + $0x8] sm:$0xff]
    %49 = vst [vmem:[#allocation2 + $0x28] sm:$0xff] %v47
    %50 = vst [vmem:[#allocation2 + $0x30] sm:$0xff] %v48
    %v51 = vlaneseq
    %v52 = vand.u32 %v51, 127
    %v53 = vadd.s32 %v52, 128
    %vm54 = vcmp.lt.s32.totalorder %v52, 0
    %v55 = vsub.s32 0, %v52
    %v56 = vsel %vm54, %v55, %v52
    %v57 = vshrl.u32 %v56, 4
    %v58 = vand.u32 %v56, 15
    %v59 = vsub.s32 0, %v58
    %v60 = vsel %vm54, %v59, %v58
    %vm61 = vcmp.lt.s32.totalorder %v53, 0
    %v62 = vsub.s32 0, %v53
    %v63 = vsel %vm61, %v62, %v53
    %v64 = vshrl.u32 %v63, 4
    %v65 = vand.u32 %v63, 15
    %v66 = vsub.s32 0, %v65
    %v67 = vsel %vm61, %v66, %v65
    %vm68 = vcmp.ne.s32.totalorder %v60, 0
    %vm69 = vcmp.ne.s32.totalorder %v67, 0
    %vm70 = vcmp.lt.s32.totalorder %v60, 0
    %vm71 = vcmp.lt.s32.totalorder %v67, 0
    %vm72 = vmand %vm70, %vm68
    %vm73 = vmand %vm71, %vm69
    %v74 = vadd.s32 %v60, 16
    %v75 = vadd.s32 %v67, 16
    %v76 = vsel %vm72, %v74, %v60
    %v77 = vsel %vm73, %v75, %v67
    %vm78 = vcmp.ne.s32.totalorder %v76, 0
    %vm79 = vcmp.ne.s32.totalorder %v77, 0
    %vm80 = vcmp.ne.s32.totalorder %v76, 15
    %vm81 = vcmp.ne.s32.totalorder %v77, 15
    %v82 = vld [vmem:[#allocation2] sm:$0xff]
    %v83 = vld [vmem:[#allocation2 + $0x8] sm:$0xff]
    %v84 = vld [vmem:[#allocation2 + $0x10] sm:$0xff]
    %v85 = vsel %vm78, 1, 0
    %v86 = vsel %vm79, 1, 0
    %vm87 = vcmp.eq.s32.totalorder %v85, 1
    %vm88 = vcmp.eq.s32.totalorder %v86, 1
    %92 = vrot.lane.b32.xlu0 %v82, 17
    %v93 = vpop.permute.xlu0 %92
    %94 = vrot.lane.b32.xlu0 %v83, 17
    %v95 = vpop.permute.xlu0 %94
    %96 = vrot.lane.b32.xlu0 %v84, 17
    %v97 = vpop.permute.xlu0 %96
    %vm98 = vcmask 138240
    %v99 = vsel %vm98, %v93, %v95
    %v100 = vsel %vm98, %v95, %v97
    %v103 = vsel %vm87, %v99, 0.0
    %v104 = vsel %vm88, %v100, 0.0
    %v105 = vsel %vm80, 1, 0
    %v106 = vsel %vm81, 1, 0
    %vm107 = vcmp.eq.s32.totalorder %v105, 1
    %vm108 = vcmp.eq.s32.totalorder %v106, 1
    %109 = vrot.lane.b32.xlu0 %v82, 15
    %v110 = vpop.permute.xlu0 %109
    %111 = vrot.lane.b32.xlu0 %v83, 15
    %v112 = vpop.permute.xlu0 %111
    %113 = vrot.lane.b32.xlu0 %v84, 15
    %v114 = vpop.permute.xlu0 %113
    %vm115 = vcmask 121856
    %v116 = vsel %vm115, %v110, %v112
    %v117 = vsel %vm115, %v112, %v114
    %v120 = vsel %vm107, %v116, 0.0
    %v121 = vsel %vm108, %v117, 0.0
    %122 = vrot.lane.b32.xlu0 %v82, 1
    %v123 = vpop.permute.xlu0 %122
    %124 = vrot.lane.b32.xlu0 %v83, 1
    %v125 = vpop.permute.xlu0 %124
    %126 = vrot.lane.b32.xlu0 %v84, 1
    %v127 = vpop.permute.xlu0 %126
    %vm128 = vcmask 7168
    %v129 = vsel %vm128, %v123, %v125
    %v130 = vsel %vm128, %v125, %v127
    %v133 = vsel %vm87, %v129, 0.0
    %v134 = vsel %vm88, %v130, 0.0
    %v135 = vld [vmem:[#allocation2 + $0x18] sm:$0xff]
    %137 = vrot.lane.b32.xlu0 %v83, 127
    %v138 = vpop.permute.xlu0 %137
    %139 = vrot.lane.b32.xlu0 %v84, 127
    %v140 = vpop.permute.xlu0 %139
    %141 = vrot.lane.b32.xlu0 %v135, 127
    %v142 = vpop.permute.xlu0 %141
    %vm143 = vcmask 1039360
    %v144 = vsel %vm143, %v138, %v140
    %v145 = vsel %vm143, %v140, %v142
    %v148 = vsel %vm107, %v144, 0.0
    %v149 = vsel %vm108, %v145, 0.0
    %150 = vrot.lane.b32.xlu0 %v83, 113
    %v151 = vpop.permute.xlu0 %150
    %152 = vrot.lane.b32.xlu0 %v84, 113
    %v153 = vpop.permute.xlu0 %152
    %154 = vrot.lane.b32.xlu0 %v135, 113
    %v155 = vpop.permute.xlu0 %154
    %vm156 = vcmask 924672
    %v157 = vsel %vm156, %v151, %v153
    %v158 = vsel %vm156, %v153, %v155
    %v161 = vsel %vm87, %v157, 0.0
    %v162 = vsel %vm88, %v158, 0.0
    %163 = vrot.lane.b32.xlu0 %v83, 111
    %v164 = vpop.permute.xlu0 %163
    %165 = vrot.lane.b32.xlu0 %v84, 111
    %v166 = vpop.permute.xlu0 %165
    %167 = vrot.lane.b32.xlu0 %v135, 111
    %v168 = vpop.permute.xlu0 %167
    %vm169 = vcmask 908288
    %v170 = vsel %vm169, %v164, %v166
    %v171 = vsel %vm169, %v166, %v168
    %v174 = vsel %vm107, %v170, 0.0
    %v175 = vsel %vm108, %v171, 0.0
    %176 = vrot.lane.b32.xlu0 %v82, 16
    %v177 = vpop.permute.xlu0 %176
    %178 = vrot.lane.b32.xlu0 %v83, 16
    %v179 = vpop.permute.xlu0 %178
    %180 = vrot.lane.b32.xlu0 %v84, 16
    %v181 = vpop.permute.xlu0 %180
    %vm182 = vcmask 130048
    %v183 = vsel %vm182, %v177, %v179
    %v184 = vsel %vm182, %v179, %v181
    %187 = vrot.lane.b32.xlu0 %v83, 112
    %v188 = vpop.permute.xlu0 %187
    %189 = vrot.lane.b32.xlu0 %v84, 112
    %v190 = vpop.permute.xlu0 %189
    %191 = vrot.lane.b32.xlu0 %v135, 112
    %v192 = vpop.permute.xlu0 %191
    %vm193 = vcmask 916480
    %v194 = vsel %vm193, %v188, %v190
    %v195 = vsel %vm193, %v190, %v192
    %v198 = vld [vmem:[#allocation2 + $0x20] sm:$0xff]
    %v199 = vld [vmem:[#allocation2 + $0x28] sm:$0xff]
    %v200 = vld [vmem:[#allocation2 + $0x30] sm:$0xff]
    %204 = vrot.lane.b32.xlu0 %v198, 17
    %v205 = vpop.permute.xlu0 %204
    %206 = vrot.lane.b32.xlu0 %v199, 17
    %v207 = vpop.permute.xlu0 %206
    %208 = vrot.lane.b32.xlu0 %v200, 17
    %v209 = vpop.permute.xlu0 %208
    %v210 = vsel %vm98, %v205, %v207
    %v211 = vsel %vm98, %v207, %v209
    %v214 = vsel %vm87, %v210, 0.0
    %v215 = vsel %vm88, %v211, 0.0
    %216 = vrot.lane.b32.xlu0 %v198, 15
    %v217 = vpop.permute.xlu0 %216
    %218 = vrot.lane.b32.xlu0 %v199, 15
    %v219 = vpop.permute.xlu0 %218
    %220 = vrot.lane.b32.xlu0 %v200, 15
    %v221 = vpop.permute.xlu0 %220
    %v222 = vsel %vm115, %v217, %v219
    %v223 = vsel %vm115, %v219, %v221
    %v226 = vsel %vm107, %v222, 0.0
    %v227 = vsel %vm108, %v223, 0.0
    %228 = vrot.lane.b32.xlu0 %v198, 1
    %v229 = vpop.permute.xlu0 %228
    %230 = vrot.lane.b32.xlu0 %v199, 1
    %v231 = vpop.permute.xlu0 %230
    %232 = vrot.lane.b32.xlu0 %v200, 1
    %v233 = vpop.permute.xlu0 %232
    %v234 = vsel %vm128, %v229, %v231
    %v235 = vsel %vm128, %v231, %v233
    %v238 = vsel %vm87, %v234, 0.0
    %v239 = vsel %vm88, %v235, 0.0
    %v240 = vld [vmem:[#allocation2 + $0x28] sm:$0xff]
    %v241 = vld [vmem:[#allocation2 + $0x30] sm:$0xff]
    %v242 = vld [vmem:[#allocation2 + $0x38] sm:$0xff]
    %246 = vrot.lane.b32.xlu0 %v240, 127
    %v247 = vpop.permute.xlu0 %246
    %248 = vrot.lane.b32.xlu0 %v241, 127
    %v249 = vpop.permute.xlu0 %248
    %250 = vrot.lane.b32.xlu0 %v242, 127
    %v251 = vpop.permute.xlu0 %250
    %v252 = vsel %vm143, %v247, %v249
    %v253 = vsel %vm143, %v249, %v251
    %v256 = vsel %vm107, %v252, 0.0
    %v257 = vsel %vm108, %v253, 0.0
    %258 = vrot.lane.b32.xlu0 %v240, 113
    %v259 = vpop.permute.xlu0 %258
    %260 = vrot.lane.b32.xlu0 %v241, 113
    %v261 = vpop.permute.xlu0 %260
    %262 = vrot.lane.b32.xlu0 %v242, 113
    %v263 = vpop.permute.xlu0 %262
    %v264 = vsel %vm156, %v259, %v261
    %v265 = vsel %vm156, %v261, %v263
    %v268 = vsel %vm87, %v264, 0.0
    %v269 = vsel %vm88, %v265, 0.0
    %270 = vrot.lane.b32.xlu0 %v240, 111
    %v271 = vpop.permute.xlu0 %270
    %272 = vrot.lane.b32.xlu0 %v241, 111
    %v273 = vpop.permute.xlu0 %272
    %274 = vrot.lane.b32.xlu0 %v242, 111
    %v275 = vpop.permute.xlu0 %274
    %v276 = vsel %vm169, %v271, %v273
    %v277 = vsel %vm169, %v273, %v275
    %v280 = vsel %vm107, %v276, 0.0
    %v281 = vsel %vm108, %v277, 0.0
    %282 = vrot.lane.b32.xlu0 %v198, 16
    %v283 = vpop.permute.xlu0 %282
    %284 = vrot.lane.b32.xlu0 %v199, 16
    %v285 = vpop.permute.xlu0 %284
    %286 = vrot.lane.b32.xlu0 %v200, 16
    %v287 = vpop.permute.xlu0 %286
    %v288 = vsel %vm182, %v283, %v285
    %v289 = vsel %vm182, %v285, %v287
    %292 = vrot.lane.b32.xlu0 %v240, 112
    %v293 = vpop.permute.xlu0 %292
    %294 = vrot.lane.b32.xlu0 %v241, 112
    %v295 = vpop.permute.xlu0 %294
    %296 = vrot.lane.b32.xlu0 %v242, 112
    %v297 = vpop.permute.xlu0 %296
    %v298 = vsel %vm193, %v293, %v295
    %v299 = vsel %vm193, %v295, %v297
    %v302 = vld [vmem:[#allocation6] sm:$0xff]
    %vm303 = vcmask 588800
    %v305 = vsel %vm303, %v302, 0
    %307 = vmatprep.subr.mxu0 %v104
    %308 = vmatpush1.msra.mxu0 %v103
    %309 = vmatprep.subr.mxu0 %v184
    %310 = vmatpush1.msra.mxu0 %v183
    %311 = vmatprep.subr.mxu0 %v121
    %312 = vmatpush1.msra.mxu0 %v120
    %313 = vmatprep.subr.mxu0 %v134
    %314 = vmatpush1.msra.mxu0 %v133
    %315 = vmatprep.subr.mxu0 %v84
    %316 = vmatpush1.msra.mxu0 %v83
    %317 = vmatprep.subr.mxu0 %v149
    %318 = vmatpush1.msra.mxu0 %v148
    %319 = vmatprep.subr.mxu0 %v162
    %320 = vmatpush1.msra.mxu0 %v161
    %321 = vmatprep.subr.mxu0 %v195
    %322 = vmatpush1.msra.mxu0 %v194
    %323 = vmatprep.subr.mxu0 %v175
    %324 = vmatpush1.msra.mxu0 %v174
    %325 = vmatprep.subr.mxu0 0.0
    %326 = vmatpush1.msra.mxu0 0.0
    %327 = vmatprep.subr.mxu0 0.0
    %328 = vmatpush1.msra.mxu0 0.0
    %329 = vmatprep.subr.mxu0 0.0
    %330 = vmatpush1.msra.mxu0 0.0
    %331 = vmatprep.subr.mxu0 0.0
    %332 = vmatpush1.msra.mxu0 0.0
    %333 = vmatprep.subr.mxu0 0.0
    %334 = vmatpush1.msra.mxu0 0.0
    %335 = vmatprep.subr.mxu0 0.0
    %336 = vmatpush1.msra.mxu0 0.0
    %337 = vmatprep.subr.mxu0 0.0
    %338 = vmatpush1.msra.mxu0 0.0
    %339 = vmatprep.subr.mxu0 0.0
    %340 = vmatpush1.msra.mxu0 0.0
    %341 = vmatprep.subr.mxu0 0.0
    %342 = vmatpush1.msra.mxu0 0.0
    %343 = vmatprep.subr.mxu0 0.0
    %344 = vmatpush1.msra.mxu0 0.0
    %345 = vmatprep.subr.mxu0 0.0
    %346 = vmatpush1.msra.mxu0 0.0
    %347 = vmatprep.subr.mxu0 0.0
    %348 = vmatpush1.msra.mxu0 0.0
    %349 = vmatprep.subr.mxu0 0.0
    %350 = vmatpush1.msra.mxu0 0.0
    %351 = vmatprep.subr.mxu0 0.0
    %352 = vmatpush1.msra.mxu0 0.0
    %353 = vmatprep.subr.mxu0 0.0
    %354 = vmatpush1.msra.mxu0 0.0
    %355 = vmatprep.subr.mxu0 0.0
    %356 = vmatpush1.msra.mxu0 0.0
    %357 = vmatprep.subr.mxu0 0.0
    %358 = vmatpush1.msra.mxu0 0.0
    %359 = vmatprep.subr.mxu0 0.0
    %360 = vmatpush1.msra.mxu0 0.0
    %361 = vmatprep.subr.mxu0 0.0
    %362 = vmatpush1.msra.mxu0 0.0
    %363 = vmatprep.subr.mxu0 0.0
    %364 = vmatpush1.msra.mxu0 0.0
    %365 = vmatprep.subr.mxu0 0.0
    %366 = vmatpush1.msra.mxu0 0.0
    %367 = vmatprep.subr.mxu0 0.0
    %368 = vmatpush1.msra.mxu0 0.0
    %369 = vmatprep.subr.mxu0 0.0
    %370 = vmatpush1.msra.mxu0 0.0
    %371 = vmatprep.mubr.f32.mxu0 0.0
    %372 = vmatmul.mubr.f32.gmra.mrb[0].mxu0 %v305
    %v373 = vpop.f32.mrb[0].mxu0
    %v374 = vadd.f32 0.0, %v373
    %v375 = vpop.f32.mrb[0].mxu0
    %v376 = vadd.f32 0.0, %v375
    %377 = vdwg.mxu0
    %378 = vmatprep.subr.mxu0 %v215
    %379 = vmatpush1.msra.mxu0 %v214
    %380 = vmatprep.subr.mxu0 %v289
    %381 = vmatpush1.msra.mxu0 %v288
    %382 = vmatprep.subr.mxu0 %v227
    %383 = vmatpush1.msra.mxu0 %v226
    %384 = vmatprep.subr.mxu0 %v239
    %385 = vmatpush1.msra.mxu0 %v238
    %386 = vmatprep.subr.mxu0 %v200
    %387 = vmatpush1.msra.mxu0 %v199
    %388 = vmatprep.subr.mxu0 %v257
    %389 = vmatpush1.msra.mxu0 %v256
    %390 = vmatprep.subr.mxu0 %v269
    %391 = vmatpush1.msra.mxu0 %v268
    %392 = vmatprep.subr.mxu0 %v299
    %393 = vmatpush1.msra.mxu0 %v298
    %394 = vmatprep.subr.mxu0 %v281
    %395 = vmatpush1.msra.mxu0 %v280
    %396 = vmatprep.subr.mxu0 0.0
    %397 = vmatpush1.msra.mxu0 0.0
    %398 = vmatprep.subr.mxu0 0.0
    %399 = vmatpush1.msra.mxu0 0.0
    %400 = vmatprep.subr.mxu0 0.0
    %401 = vmatpush1.msra.mxu0 0.0
    %402 = vmatprep.subr.mxu0 0.0
    %403 = vmatpush1.msra.mxu0 0.0
    %404 = vmatprep.subr.mxu0 0.0
    %405 = vmatpush1.msra.mxu0 0.0
    %406 = vmatprep.subr.mxu0 0.0
    %407 = vmatpush1.msra.mxu0 0.0
    %408 = vmatprep.subr.mxu0 0.0
    %409 = vmatpush1.msra.mxu0 0.0
    %410 = vmatprep.subr.mxu0 0.0
    %411 = vmatpush1.msra.mxu0 0.0
    %412 = vmatprep.subr.mxu0 0.0
    %413 = vmatpush1.msra.mxu0 0.0
    %414 = vmatprep.subr.mxu0 0.0
    %415 = vmatpush1.msra.mxu0 0.0
    %416 = vmatprep.subr.mxu0 0.0
    %417 = vmatpush1.msra.mxu0 0.0
    %418 = vmatprep.subr.mxu0 0.0
    %419 = vmatpush1.msra.mxu0 0.0
    %420 = vmatprep.subr.mxu0 0.0
    %421 = vmatpush1.msra.mxu0 0.0
    %422 = vmatprep.subr.mxu0 0.0
    %423 = vmatpush1.msra.mxu0 0.0
    %424 = vmatprep.subr.mxu0 0.0
    %425 = vmatpush1.msra.mxu0 0.0
    %426 = vmatprep.subr.mxu0 0.0
    %427 = vmatpush1.msra.mxu0 0.0
    %428 = vmatprep.subr.mxu0 0.0
    %429 = vmatpush1.msra.mxu0 0.0
    %430 = vmatprep.subr.mxu0 0.0
    %431 = vmatpush1.msra.mxu0 0.0
    %432 = vmatprep.subr.mxu0 0.0
    %433 = vmatpush1.msra.mxu0 0.0
    %434 = vmatprep.subr.mxu0 0.0
    %435 = vmatpush1.msra.mxu0 0.0
    %436 = vmatprep.subr.mxu0 0.0
    %437 = vmatpush1.msra.mxu0 0.0
    %438 = vmatprep.subr.mxu0 0.0
    %439 = vmatpush1.msra.mxu0 0.0
    %440 = vmatprep.subr.mxu0 0.0
    %441 = vmatpush1.msra.mxu0 0.0
    %442 = vmatprep.mubr.f32.mxu0 0.0
    %443 = vmatmul.mubr.f32.gmra.mrb[0].mxu0 %v305
    %v444 = vpop.f32.mrb[0].mxu0
    %v445 = vadd.f32 0.0, %v444
    %v446 = vpop.f32.mrb[0].mxu0
    %v447 = vadd.f32 0.0, %v446
    %448 = vdwg.mxu0
    %449 = vst [vmem:[#allocation8] sm:$0xff] %v374
    %450 = vst [vmem:[#allocation8 + $0x8] sm:$0xff] %v376
    %s451 = scalar_lea.vmem [#allocation8], 16
    %452 = vst [vmem:[%s451] sm:$0xff] %v445
    %453 = vst [vmem:[%s451 + $0x8] sm:$0xff] %v447
    // Predicated region
    $region18: #{tpu_custom_call.1} parent=1 // pred_check
      _
    $region19: #{tpu_custom_call.1} parent=1 // pred_check_branch
      %455 = sbr.rel (0) target = $region21
    $region20: #{tpu_custom_call.1} parent=1 // pred_region
      %s457 = ssub.s32 512, 512
      %458 = vsyncadd [#allocation5], %s457
      %s459 = sshll.u32 [#allocation8], 4
      %s460 = int_to_ptr.vmem [resolvable:$true] %s459
      %465 = dma.vmem_to_hbm [thread:$0]  %s460, 512, %s2, [#allocation5], 256, 256, 16
    $region21: #{tpu_custom_call.1} parent=1 // pred_fallthru
      _
    // Predicated region
    $region22: #{tpu_custom_call.1} parent=1 // pred_check
      _
    $region23: #{tpu_custom_call.1} parent=1 // pred_check_branch
      %467 = sbr.rel (0) target = $region25
    $region24: #{tpu_custom_call.1} parent=1 // pred_region
      %468 = dma.done [#allocation5], 512
    $region25: #{tpu_custom_call.1} parent=1 // pred_fallthru
      _
    %469 = vsyncpa [#allocation4], 1
    %470 = vsyncpa [#allocation7], 1
    %471 = vsyncpa [#allocation5], 1

</llo_original>
